<compile_context>
chip_gen: v5e
topology: v5e:2x2
jax: 0.10.0
libtpu: 0.0.40
codegen_flags: <defaults>
</compile_context>

<pallas_src>
import jax
import jax.numpy as jnp
from jax.experimental import pallas as pl
from jax.experimental.pallas import tpu as pltpu

TARGET_TILE_BYTES = 4 * 1024 * 1024      # ~4 MiB feature tile per grid step
VMEM_LIMIT_BYTES = 32 * 1024 * 1024      # explicit, same on v5e / v6e / v7x
SMALL_INPUT_BYTES = 2 * 1024 * 1024      # below this, plain XLA fusion wins


def _round_up(x, m):
    return ((x + m - 1) // m) * m


def _prod(xs):
    out = 1
    for x in xs:
        out *= int(x)
    return out


def _factorize_broadcast(f_shape, a_shape):
    """Factor feature as (P, C, L) and attention as (P, 1, L).

    Requires attention broadcastable to feature.shape with the broadcast
    axes (size 1 in attention, >1 in feature) forming one contiguous run.
    Returns (P, C, L) or None if not expressible without a copy.
    """
    nd = len(f_shape)
    a = (1,) * (nd - len(a_shape)) + tuple(int(d) for d in a_shape)
    f = tuple(int(d) for d in f_shape)
    for af, ff in zip(a, f):
        if af != ff and af != 1:
            return None                       # not broadcastable to feature
    bcast = [i for i in range(nd) if a[i] == 1 and f[i] != 1]
    if not bcast:
        return 1, 1, _prod(f)                 # same shape -> flat stream
    i0, i1 = bcast[0], bcast[-1] + 1
    if (i1 - i0) != len(bcast):
        return None                           # non-contiguous broadcast axes
    P, C, L = _prod(f[:i0]), _prod(f[i0:i1]), _prod(f[i1:])
    if L < 128:
        return None                           # not lane-dense; fall back
    return P, C, L


def _attention_connection_kernel(param_ref, f_ref, a_ref, o_ref):
    # (param + attention) * feature on one VMEM tile.  The attention block is
    # (tp, 1, tl) and broadcasts across the channel (sublane) dim in-register.
    p = param_ref[0]                                   # f32 scalar from SMEM
    a = a_ref[...].astype(jnp.float32)
    f = f_ref[...].astype(jnp.float32)
    o_ref[...] = ((a + p) * f).astype(o_ref.dtype)


def attention_connection(param, feature, attention, *, force_pallas=False):
    """Pallas forward of AttentionConnection: (param + attention) * feature."""
    param = jnp.asarray(param)
    feature = jnp.asarray(feature)
    attention = jnp.asarray(attention)

    out_dtype = jnp.result_type(param, feature, attention)
    full_shape = jnp.broadcast_shapes(feature.shape, attention.shape)
    total_out = _prod(full_shape)

    # Tiny inputs: pallas_call fixed cost dominates; let XLA fuse it.
    if (not force_pallas) and total_out * jnp.dtype(out_dtype).itemsize < SMALL_INPUT_BYTES:
        return ((param.reshape(()) + attention) * feature).astype(out_dtype)

    # Degenerate case where attention enlarges feature (rare for this module).
    if full_shape != feature.shape:
        feature = jnp.broadcast_to(feature, full_shape)

    fact = _factorize_broadcast(feature.shape, attention.shape)
    if fact is None:
        # TODO(synk): non-contiguous / trailing broadcast axes fall back to a
        # materialized broadcast copy instead of an in-kernel broadcast.
        attention = jnp.broadcast_to(attention, feature.shape)
        fact = (1, 1, feature.size)
    P, C, L = fact

    f3 = feature.reshape(P, C, L)                  # free bitcast reshapes
    a3 = attention.reshape(P, 1, L)
    p1 = param.astype(jnp.float32).reshape(1)      # scalar, SMEM-resident

    # ---- tile selection: lane-dense, ~TARGET_TILE_BYTES feature tile ----
    itemsize = max(f3.dtype.itemsize, jnp.dtype(out_dtype).itemsize)
    target_elems = max(1024, TARGET_TILE_BYTES // itemsize)

    c_min = C if C <= 8 else 8
    l_budget = max(128, target_elems // c_min)
    tile_l = L if L <= l_budget else max(128, (l_budget // 128) * 128)

    if C <= 8:
        tile_c = C                                  # == full dim -> legal
    else:
        per_l = max(1, target_elems // tile_l)
        tile_c = max(8, min(C, (per_l // 8) * 8))   # multiple of 8 (or == C)

    tile_p = max(1, min(P, target_elems // (tile_c * tile_l)))

    # v7x megacore: make sure the "parallel" axes have >= 2 steps to shard.
    if pl.cdiv(P, tile_p) * pl.cdiv(L, tile_l) < 2:
        if P >= 2:
            tile_p = pl.cdiv(P, 2)
        elif L >= 256:
            tile_l = _round_up(pl.cdiv(L, 2), 128)

    grid = (pl.cdiv(P, tile_p), pl.cdiv(L, tile_l), pl.cdiv(C, tile_c))

    out3 = pl.pallas_call(
        _attention_connection_kernel,
        out_shape=jax.ShapeDtypeStruct((P, C, L), out_dtype),
        grid=grid,
        in_specs=[
            # learnable scalar: whole array, SMEM-resident across the grid
            pl.BlockSpec(memory_space=pltpu.MemorySpace.SMEM),
            # feature: (tile_p, tile_c, tile_l) blocks, double-buffered
            pl.BlockSpec((tile_p, tile_c, tile_l),
                         lambda ip, il, ic: (ip, ic, il)),
            # attention: index_map ignores the C grid axis, so its block is
            # fetched once per (p, l) tile and reused across channel steps.
            pl.BlockSpec((tile_p, 1, tile_l),
                         lambda ip, il, ic: (ip, 0, il)),
        ],
        out_specs=pl.BlockSpec((tile_p, tile_c, tile_l),
                               lambda ip, il, ic: (ip, ic, il)),
        compiler_params=pltpu.CompilerParams(
            dimension_semantics=("parallel", "parallel", "arbitrary"),
            vmem_limit_bytes=VMEM_LIMIT_BYTES,
        ),
    )(p1, f3, a3)

    return out3.reshape(feature.shape)


if __name__ == "__main__":
    key = jax.random.PRNGKey(0)
    kf, ka = jax.random.split(key)
    # feature: (B, C, D, H, W) NCDHW; attention: single-channel spatial map
    # broadcast over C (PyTorch broadcasting semantics).
    feature = jax.random.normal(kf, (2, 4, 16, 16, 16), jnp.float32)
    attention = jax.random.uniform(ka, (2, 1, 16, 16, 16), jnp.float32)
    param = jnp.ones((1,), jnp.float32)   # factor=1.0 (module default)

    out = attention_connection(param, feature, attention, force_pallas=True)
    out = jax.block_until_ready(out)

    ref = (param + attention) * feature
    assert out.shape == ref.shape, out.shape
    assert out.dtype == ref.dtype, out.dtype
    assert bool(jnp.all(jnp.isfinite(out)))
    assert bool(jnp.allclose(out, ref, atol=1e-6, rtol=1e-6))

    # The small-input XLA fast path must agree with the kernel path too.
    out_fast = attention_connection(param, feature, attention)
    assert bool(jnp.allclose(out_fast, ref, atol=1e-6, rtol=1e-6))

    print("KERNEL_OK")
</pallas_src>

<mosaic_0001>
module attributes {stable_mosaic.version = 11 : i64} {
  func.func @_attention_connection_kernel(%arg0: i32, %arg1: i32, %arg2: i32, %arg3: memref<1xf32, #tpu.memory_space<smem>>, %arg4: memref<1x4x4096xf32, #tpu.memory_space<vmem>>, %arg5: memref<1x1x4096xf32, #tpu.memory_space<vmem>>, %arg6: memref<1x4x4096xf32, #tpu.memory_space<vmem>>) attributes {dimension_semantics = [#tpu.dimension_semantics<parallel>, #tpu.dimension_semantics<parallel>, #tpu.dimension_semantics<arbitrary>], iteration_bounds = array<i64: 2, 1, 1>, scalar_prefetch = 0 : i64, scratch_operands = 0 : i64, tpu.core_type = #tpu.core_type<tc>, window_params = [{transform_indices = @transform_0, window_bounds = array<i64: 1>}, {transform_indices = @transform_1, window_bounds = array<i64: 1, 4, 4096>}, {transform_indices = @transform_2, window_bounds = array<i64: 1, 1, 4096>}, {transform_indices = @transform_3, window_bounds = array<i64: 1, 4, 4096>}]} {
    %c0 = arith.constant 0 : index
    %0 = memref.load %arg3[%c0] : memref<1xf32, #tpu.memory_space<smem>>
    %c0_0 = arith.constant 0 : index
    %c0_1 = arith.constant 0 : index
    %c0_2 = arith.constant 0 : index
    %1 = vector.load %arg5[%c0_0, %c0_1, %c0_2] : memref<1x1x4096xf32, #tpu.memory_space<vmem>>, vector<1x1x4096xf32>
    %c0_3 = arith.constant 0 : index
    %c0_4 = arith.constant 0 : index
    %c0_5 = arith.constant 0 : index
    %2 = vector.load %arg4[%c0_3, %c0_4, %c0_5] : memref<1x4x4096xf32, #tpu.memory_space<vmem>>, vector<1x4x4096xf32>
    %3 = vector.broadcast %0 : f32 to vector<1x1x4096xf32>
    %4 = arith.addf %1, %3 : vector<1x1x4096xf32>
    %5 = vector.broadcast %4 : vector<1x1x4096xf32> to vector<1x4x4096xf32>
    %6 = arith.mulf %5, %2 : vector<1x4x4096xf32>
    %c0_6 = arith.constant 0 : index
    %c0_7 = arith.constant 0 : index
    %c0_8 = arith.constant 0 : index
    %7 = vector.load %arg6[%c0_6, %c0_7, %c0_8] : memref<1x4x4096xf32, #tpu.memory_space<vmem>>, vector<1x4x4096xf32>
    tpu.vector_store %arg6[%c0_6, %c0_7, %c0_8], %6 {strides = array<i32>} : memref<1x4x4096xf32, #tpu.memory_space<vmem>>, vector<1x4x4096xf32>,
    return
  }
  func.func @transform_0(%arg0: i32, %arg1: i32, %arg2: i32) -> i32 {
    %c0_i32 = arith.constant 0 : i32
    %c0_i32_0 = arith.constant 0 : i32
    return %c0_i32 : i32
  }
  func.func @transform_1(%arg0: i32, %arg1: i32, %arg2: i32) -> (i32, i32, i32) {
    %c0_i32 = arith.constant 0 : i32
    return %arg0, %arg2, %arg1 : i32, i32, i32
  }
  func.func @transform_2(%arg0: i32, %arg1: i32, %arg2: i32) -> (i32, i32, i32) {
    %c0_i32 = arith.constant 0 : i32
    %c0_i32_0 = arith.constant 0 : i32
    return %arg0, %c0_i32, %arg1 : i32, i32, i32
  }
  func.func @transform_3(%arg0: i32, %arg1: i32, %arg2: i32) -> (i32, i32, i32) {
    %c0_i32 = arith.constant 0 : i32
    return %arg0, %arg2, %arg1 : i32, i32, i32
  }
}

</mosaic_0001>

<llo_original>
// kernel: tpu_custom_call.1
$region0: #{tpu_custom_call.1}
  #allocation0 [shape = 'u32[]', space=smem, size = 0x4, offset = 0x4, fixed_abs, tag = 'smem constant byte address 0x4 - core index']
  #allocation1 [shape = 'u32[72,128]{1,0:T(1,128)}', space=vmem, size = 0x9000, scoped, tag = 'internal scratch']
  #allocation2 [shape = 'f32[1]{0:T(128)S(6)}', space=smem, size = 0x200, scoped, tag = 'scoped memory for tpu_custom_call.1']
  %s0 = inlined_call_operand.<no memory space> [shape: f32[1], index: 0, kind: input, shape index: {}]
  %s1 = inlined_call_operand.hbm [shape: f32[2,4,4096], index: 1, kind: input, shape index: {}]
  %s2 = inlined_call_operand.hbm [shape: f32[2,1,4096], index: 2, kind: input, shape index: {}]
  %s3 = inlined_call_operand.hbm [shape: f32[2,4,4096], index: 3, kind: output, shape index: {}]
  %s4 = sld [smem:[#allocation0]]
  $region53: #{tpu_custom_call.1} parent=0
    _
  %s6 = ssub.s32 1, %s4
  %s7 = scalar_select 0, %s6, %s4
  %8 = sst [smem:[#allocation2]] %s0
  $region1: #{tpu_custom_call.1} parent=0
    #allocation3 [shape = 'u8[131072]{0}', space=vmem, size = 0x20000, scoped, tag = 'input window, operand 1']
    #allocation4 [shape = 's32[2]{0}', space=sflag, size = 0x8, scoped, tag = 'scoped memory for tpu_custom_call.1']
    #allocation5 [shape = 's32[2]{0}', space=sflag, size = 0x8, scoped, tag = 'scoped memory for tpu_custom_call.1']
    #allocation6 [shape = 'u8[32768]{0}', space=vmem, size = 0x8000, scoped, tag = 'input window, operand 2']
    #allocation7 [shape = 's32[2]{0}', space=sflag, size = 0x8, scoped, tag = 'scoped memory for tpu_custom_call.1']
    #allocation8 [shape = 'u8[131072]{0}', space=vmem, size = 0x20000, scoped, tag = 'output window, operand 0']
    %9 = vsyncpa [#allocation4], 0
    %s10 = scalar_lea.sflag [#allocation4], 1
    %11 = vsyncpa %s10, 0
    %12 = vsyncpa [#allocation7], 0
    %s13 = scalar_lea.sflag [#allocation7], 1
    %14 = vsyncpa %s13, 0
    %15 = vsyncpa [#allocation5], 0
    %s16 = scalar_lea.sflag [#allocation5], 1
    %17 = vsyncpa %s16, 0
    loop: start=0, step=1, limit=4
    $region2: #{tpu_custom_call.1} parent=1 // loop_pre_header
      _
    $region3: #{tpu_custom_call.1} parent=1 // loop_header
      %s19 = sphi 0, %s23
      %p20 = scmp.ge.s32.totalorder %s19, 4
      %s26 = sphi 0, %s45
      %s27 = sphi 0, %s41
      %s28 = sphi 0, %s37
      %s29 = sphi 0, %s26
      %s30 = sphi 0, %s27
      %s31 = sphi 0, %s28
      %s32 = sphi 0, %s29
      %s33 = sphi 0, %s30
      %s34 = sphi 0, %s31
      %s46 = sphi 0, %s46
      %s48 = sphi 0, %s46
      %s49 = sphi 0, %s48
      %s63 = sphi 0, %s49
      %s73 = sphi 0, %s75
      %s76 = sphi 0, %s73
      %s77 = sphi 0, %s76
      %s93 = sphi 0, %s77
      %s101 = sphi 0, %s103
      %s104 = sphi 0, %s101
      %s105 = sphi 0, %s104
      %s121 = sphi 0, %s105
      %s131 = sphi 0, %s133
      %s134 = sphi 0, %s131
      %s135 = sphi 0, %s134
      %s151 = sphi 0, %s135
    $region4: #{tpu_custom_call.1} parent=1 // loop_header_branch
      %22 = sbr.rel (%p20) target = $region8
    $region5: #{tpu_custom_call.1} parent=1 // loop_body
      %s24 = ssub.s32 %s19, 1
      %s25 = ssub.s32 %s19, 2
      %s35 = sadd.s32 1, %s28
      %p36 = scmp.ge.s32.totalorder %s35, 1
      %s37 = scalar_select %p36, 0, %s35
      %s38 = sadd.s32 1, %s27
      %s39 = scalar_select %p36, %s38, %s27
      %p40 = scmp.ge.s32.totalorder %s39, 1
      %s41 = scalar_select %p40, 0, %s39
      %s42 = sadd.s32 1, %s26
      %s43 = scalar_select %p40, %s42, %s26
      %p44 = scmp.ge.s32.totalorder %s43, 2
      %s45 = scalar_select %p44, 0, %s43
      %s47 = sadd.s32 %s46, 1
      %p50 = scmp.eq.s32.totalorder %s19, 1
      %p51 = scmp.ne.s32.totalorder %s46, %s48
      %p52 = scmp.eq.s32.totalorder %s19, 0
      %p53 = por %p51, %p52
      %p54 = scmp.ne.s32.totalorder %s46, %s48
      %p55 = scmp.eq.s32.totalorder %s24, 1
      %p56 = por %p54, %p55
      %p57 = scmp.ne.s32.totalorder %s48, %s49
      %p58 = scmp.eq.s32.totalorder %s24, 0
      %p59 = por %p57, %p58
      %p60 = scmp.ne.s32.totalorder %s48, %s49
      %p61 = scmp.eq.s32.totalorder %s25, 1
      %p62 = por %p60, %p61
      %p64 = scmp.ne.s32.totalorder %s49, %s63
      %p65 = scmp.eq.s32.totalorder %s25, 0
      %p66 = por %p64, %p65
      %s67 = ssub.s32 %s26, %s45
      %s68 = ssub.s32 %s28, %s37
      %s69 = sor.u32 %s67, %s68
      %s70 = ssub.s32 %s27, %s41
      %s71 = sor.u32 %s69, %s70
      %p72 = scmp.eq.s32.totalorder %s71, 0
      %s74 = sadd.s32 %s73, 1
      %s75 = scalar_select %p72, %s73, %s74
      %p78 = pneg %p72
      %p79 = scmp.eq.s32.totalorder %s19, 1
      %p80 = por %p78, %p79
      %p81 = scmp.ne.s32.totalorder %s73, %s76
      %p82 = scmp.eq.s32.totalorder %s19, 0
      %p83 = por %p81, %p82
      %p84 = scmp.ne.s32.totalorder %s73, %s76
      %p85 = scmp.eq.s32.totalorder %s24, 1
      %p86 = por %p84, %p85
      %p87 = scmp.ne.s32.totalorder %s76, %s77
      %p88 = scmp.eq.s32.totalorder %s24, 0
      %p89 = por %p87, %p88
      %p90 = scmp.ne.s32.totalorder %s76, %s77
      %p91 = scmp.eq.s32.totalorder %s25, 1
      %p92 = por %p90, %p91
      %p94 = scmp.ne.s32.totalorder %s77, %s93
      %p95 = scmp.eq.s32.totalorder %s25, 0
      %p96 = por %p94, %p95
      %s97 = ssub.s32 %s26, %s45
      %s98 = ssub.s32 %s27, %s41
      %s99 = sor.u32 %s97, %s98
      %p100 = scmp.eq.s32.totalorder %s99, 0
      %s102 = sadd.s32 %s101, 1
      %s103 = scalar_select %p100, %s101, %s102
      %p106 = pneg %p100
      %p107 = scmp.eq.s32.totalorder %s19, 1
      %p108 = por %p106, %p107
      %p109 = scmp.ne.s32.totalorder %s101, %s104
      %p110 = scmp.eq.s32.totalorder %s19, 0
      %p111 = por %p109, %p110
      %p112 = scmp.ne.s32.totalorder %s101, %s104
      %p113 = scmp.eq.s32.totalorder %s24, 1
      %p114 = por %p112, %p113
      %p115 = scmp.ne.s32.totalorder %s104, %s105
      %p116 = scmp.eq.s32.totalorder %s24, 0
      %p117 = por %p115, %p116
      %p118 = scmp.ne.s32.totalorder %s104, %s105
      %p119 = scmp.eq.s32.totalorder %s25, 1
      %p120 = por %p118, %p119
      %p122 = scmp.ne.s32.totalorder %s105, %s121
      %p123 = scmp.eq.s32.totalorder %s25, 0
      %p124 = por %p122, %p123
      %s125 = ssub.s32 %s26, %s45
      %s126 = ssub.s32 %s28, %s37
      %s127 = sor.u32 %s125, %s126
      %s128 = ssub.s32 %s27, %s41
      %s129 = sor.u32 %s127, %s128
      %p130 = scmp.eq.s32.totalorder %s129, 0
      %s132 = sadd.s32 %s131, 1
      %s133 = scalar_select %p130, %s131, %s132
      %p136 = pneg %p130
      %p137 = scmp.eq.s32.totalorder %s19, 1
      %p138 = por %p136, %p137
      %p139 = scmp.ne.s32.totalorder %s131, %s134
      %p140 = scmp.eq.s32.totalorder %s19, 0
      %p141 = por %p139, %p140
      %p142 = scmp.ne.s32.totalorder %s131, %s134
      %p143 = scmp.eq.s32.totalorder %s24, 1
      %p144 = por %p142, %p143
      %p145 = scmp.ne.s32.totalorder %s134, %s135
      %p146 = scmp.eq.s32.totalorder %s24, 0
      %p147 = por %p145, %p146
      %p148 = scmp.ne.s32.totalorder %s134, %s135
      %p149 = scmp.eq.s32.totalorder %s25, 1
      %p150 = por %p148, %p149
      %p152 = scmp.ne.s32.totalorder %s135, %s151
      %p153 = scmp.eq.s32.totalorder %s25, 0
      %p154 = por %p152, %p153
      %p155 = scmp.le.s32.totalorder 1, %s19
      %p156 = scmp.lt.s32.totalorder %s19, 3
      %p157 = pnand %p155, %p156
      %p158 = pneg %p157
      // Predicated region
      $region9: #{tpu_custom_call.1} parent=5 // pred_check
        _
      $region10: #{tpu_custom_call.1} parent=5 // pred_check_branch
        %160 = sbr.rel (%p157) target = $region12
      $region11: #{tpu_custom_call.1} parent=5 // pred_region
        %s161 = ssub.s32 %s19, 1
        // Predicated region
        $region13: #{tpu_custom_call.1} parent=11 // pred_check
          %p162 = pneg %p59
        $region14: #{tpu_custom_call.1} parent=11 // pred_check_branch
          %164 = sbr.rel (%p162) target = $region16
        $region15: #{tpu_custom_call.1} parent=11 // pred_region
          _
        $region16: #{tpu_custom_call.1} parent=11 // pred_fallthru
          _
      $region12: #{tpu_custom_call.1} parent=5 // pred_fallthru
        _
      %p165 = scmp.lt.s32.totalorder %s19, 2
      // Predicated region
      $region17: #{tpu_custom_call.1} parent=5 // pred_check
        %p166 = pneg %p165
      $region18: #{tpu_custom_call.1} parent=5 // pred_check_branch
        %168 = sbr.rel (%p166) target = $region20
      $region19: #{tpu_custom_call.1} parent=5 // pred_region
        // Predicated region
        $region21: #{tpu_custom_call.1} parent=19 // pred_check
          %p169 = pneg %p83
        $region22: #{tpu_custom_call.1} parent=19 // pred_check_branch
          %171 = sbr.rel (%p169) target = $region24
        $region23: #{tpu_custom_call.1} parent=19 // pred_region
          %s172 = sand.u32 %s73, 1
          %s173 = scalar_lea.sflag [#allocation4], %s172
          %s174 = sand.u32 %s73, 1
          %s175 = smul.addr %s174, 128
          %s176 = scalar_lea.vmem [#allocation3], %s175
          %s177 = smul.u32 32, %s27
          %179 = vsyncadd %s173, 0
          %s180 = smul.addr %s28, 32
          %s181 = sadd.s32 %s177, %s180
          %s182 = smul.addr %s26, 32
          %s183 = sadd.s32 %s181, %s182
          %s184 = smul.addr %s183, 4
          %s185 = scalar_lea.hbm %s1, %s184
          %s187 = sshll.u32 %s185, 4
          %s188 = int_to_ptr.hbm [resolvable:$true] %s187
          %s189 = sshll.u32 %s176, 4
          %s190 = int_to_ptr.vmem [resolvable:$true] %s189
          %192 = dma.hbm_to_vmem [thread:$0]  %s188, 2048, %s190, %s173
        $region24: #{tpu_custom_call.1} parent=19 // pred_fallthru
          _
        // Predicated region
        $region25: #{tpu_custom_call.1} parent=19 // pred_check
          %p193 = pneg %p111
        $region26: #{tpu_custom_call.1} parent=19 // pred_check_branch
          %195 = sbr.rel (%p193) target = $region28
        $region27: #{tpu_custom_call.1} parent=19 // pred_region
          %s196 = sand.u32 %s101, 1
          %s197 = scalar_lea.sflag [#allocation7], %s196
          %s198 = sand.u32 %s101, 1
          %s199 = smul.addr %s198, 32
          %s200 = scalar_lea.vmem [#allocation6], %s199
          %s201 = smul.u32 32, %s27
          %203 = vsyncadd %s197, 0
          %s204 = smul.addr %s26, 32
          %s205 = sadd.s32 %s201, %s204
          %s206 = scalar_lea.hbm %s2, %s205
          %s208 = sshll.u32 %s206, 4
          %s209 = int_to_ptr.hbm [resolvable:$true] %s208
          %s210 = sshll.u32 %s200, 4
          %s211 = int_to_ptr.vmem [resolvable:$true] %s210
          %213 = dma.hbm_to_vmem [thread:$0]  %s209, 512, %s211, %s197
        $region28: #{tpu_custom_call.1} parent=19 // pred_fallthru
          _
      $region20: #{tpu_custom_call.1} parent=5 // pred_fallthru
        _
      %p214 = scmp.le.s32.totalorder 1, %s19
      %p215 = scmp.lt.s32.totalorder %s19, 3
      %p216 = pnand %p214, %p215
      %p217 = pneg %p216
      // Predicated region
      $region29: #{tpu_custom_call.1} parent=5 // pred_check
        _
      $region30: #{tpu_custom_call.1} parent=5 // pred_check_branch
        %219 = sbr.rel (%p216) target = $region32
      $region31: #{tpu_custom_call.1} parent=5 // pred_region
        %s220 = ssub.s32 %s19, 1
        %s221 = sand.u32 %s76, 1
        %s222 = scalar_lea.sflag [#allocation4], %s221
        %s223 = sand.u32 %s76, 1
        %s224 = smul.addr %s223, 128
        %s225 = scalar_lea.vmem [#allocation3], %s224
        // Predicated region
        $region33: #{tpu_custom_call.1} parent=31 // pred_check
          %p226 = pneg %p89
        $region34: #{tpu_custom_call.1} parent=31 // pred_check_branch
          %228 = sbr.rel (%p226) target = $region36
        $region35: #{tpu_custom_call.1} parent=31 // pred_region
          %230 = dma.done %s222, 2048
        $region36: #{tpu_custom_call.1} parent=31 // pred_fallthru
          _
        %s231 = sand.u32 %s104, 1
        %s232 = scalar_lea.sflag [#allocation7], %s231
        %s233 = sand.u32 %s104, 1
        %s234 = smul.addr %s233, 32
        %s235 = scalar_lea.vmem [#allocation6], %s234
        // Predicated region
        $region37: #{tpu_custom_call.1} parent=31 // pred_check
          %p236 = pneg %p117
        $region38: #{tpu_custom_call.1} parent=31 // pred_check_branch
          %238 = sbr.rel (%p236) target = $region40
        $region39: #{tpu_custom_call.1} parent=31 // pred_region
          %240 = dma.done %s232, 512
        $region40: #{tpu_custom_call.1} parent=31 // pred_fallthru
          _
        %p241 = pneg %p59
        %p242 = pneg %p56
        %s243 = sand.u32 %s76, 1
        %s244 = scalar_lea.sflag [#allocation4], %s243
        %s245 = sand.u32 %s76, 1
        %s246 = smul.addr %s245, 128
        %s247 = scalar_lea.vmem [#allocation3], %s246
        %p248 = pneg %p89
        %p249 = pneg %p86
        %s250 = sand.u32 %s104, 1
        %s251 = scalar_lea.sflag [#allocation7], %s250
        %s252 = sand.u32 %s104, 1
        %s253 = smul.addr %s252, 32
        %s254 = scalar_lea.vmem [#allocation6], %s253
        %p255 = pneg %p117
        %p256 = pneg %p114
        %p257 = pneg %p147
        %p258 = pneg %p144
        %s259 = sand.u32 %s134, 1
        %s260 = scalar_lea.sflag [#allocation5], %s259
        %s261 = sand.u32 %s134, 1
        %s262 = smul.addr %s261, 128
        %s263 = scalar_lea.vmem [#allocation8], %s262
        %s264 = smul.u32 32, %s30
        %s265 = smul.u32 32, %s30
        %s266 = smul.u32 32, %s30
        %s267 = sld [smem:[#allocation2]]
        %v268 = vld [vmem:[%s235] sm:$0xff]
        %v269 = vld [vmem:[%s235 + $0x8] sm:$0xff]
        %v270 = vld [vmem:[%s235 + $0x10] sm:$0xff]
        %v271 = vld [vmem:[%s235 + $0x18] sm:$0xff]
        %v272 = vld [vmem:[%s225] sm:$0xff]
        %v273 = vld [vmem:[%s225 + $0x8] sm:$0xff]
        %v274 = vld [vmem:[%s225 + $0x10] sm:$0xff]
        %v275 = vld [vmem:[%s225 + $0x18] sm:$0xff]
        %v276 = vld [vmem:[%s225 + $0x20] sm:$0xff]
        %v277 = vld [vmem:[%s225 + $0x28] sm:$0xff]
        %v278 = vld [vmem:[%s225 + $0x30] sm:$0xff]
        %v279 = vld [vmem:[%s225 + $0x38] sm:$0xff]
        %v280 = vld [vmem:[%s225 + $0x40] sm:$0xff]
        %v281 = vld [vmem:[%s225 + $0x48] sm:$0xff]
        %v282 = vld [vmem:[%s225 + $0x50] sm:$0xff]
        %v283 = vld [vmem:[%s225 + $0x58] sm:$0xff]
        %v284 = vld [vmem:[%s225 + $0x60] sm:$0xff]
        %v285 = vld [vmem:[%s225 + $0x68] sm:$0xff]
        %v286 = vld [vmem:[%s225 + $0x70] sm:$0xff]
        %v287 = vld [vmem:[%s225 + $0x78] sm:$0xff]
        %v288 = vstv %s267
        %v289 = vadd.f32 %v268, %v288
        %v290 = vadd.f32 %v269, %v288
        %v291 = vadd.f32 %v270, %v288
        %v292 = vadd.f32 %v271, %v288
        %v297 = vperm.slane %v289, 0
        %v298 = vperm.slane %v289, 1
        %v299 = vperm.slane %v289, 2
        %v300 = vperm.slane %v289, 3
        %v301 = vperm.slane %v289, 4
        %v302 = vperm.slane %v289, 5
        %v303 = vperm.slane %v289, 6
        %v304 = vperm.slane %v289, 7
        %v305 = vperm.slane %v290, 0
        %v306 = vperm.slane %v290, 1
        %v307 = vperm.slane %v290, 2
        %v308 = vperm.slane %v290, 3
        %v309 = vperm.slane %v290, 4
        %v310 = vperm.slane %v290, 5
        %v311 = vperm.slane %v290, 6
        %v312 = vperm.slane %v290, 7
        %v313 = vperm.slane %v291, 0
        %v314 = vperm.slane %v291, 1
        %v315 = vperm.slane %v291, 2
        %v316 = vperm.slane %v291, 3
        %v317 = vperm.slane %v291, 4
        %v318 = vperm.slane %v291, 5
        %v319 = vperm.slane %v291, 6
        %v320 = vperm.slane %v291, 7
        %v321 = vperm.slane %v292, 0
        %v322 = vperm.slane %v292, 1
        %v323 = vperm.slane %v292, 2
        %v324 = vperm.slane %v292, 3
        %v325 = vperm.slane %v292, 4
        %v326 = vperm.slane %v292, 5
        %v327 = vperm.slane %v292, 6
        %v328 = vperm.slane %v292, 7
        %377 = vst [vmem:[#allocation1] ss:$2 sm:$0xff] %v272
        %s378 = scalar_lea.vmem [#allocation1], 16
        %379 = vst [vmem:[%s378] ss:$2 sm:$0xff] %v273
        %s380 = scalar_lea.vmem [#allocation1], 32
        %381 = vst [vmem:[%s380] ss:$2 sm:$0xff] %v274
        %s382 = scalar_lea.vmem [#allocation1], 48
        %383 = vst [vmem:[%s382] ss:$2 sm:$0xff] %v275
        %v384 = vld.sshfl [vmem:[#allocation1] sm:$0xff pattern:$0x75316420]
        %v385 = vld.sshfl [vmem:[#allocation1 + $0x8] sm:$0xff pattern:$0x75316420]
        %v386 = vld.sshfl [vmem:[#allocation1 + $0x10] sm:$0xff pattern:$0x75316420]
        %v387 = vld.sshfl [vmem:[#allocation1 + $0x18] sm:$0xff pattern:$0x75316420]
        %v388 = vld.sshfl [vmem:[#allocation1 + $0x20] sm:$0xff pattern:$0x75316420]
        %v389 = vld.sshfl [vmem:[#allocation1 + $0x28] sm:$0xff pattern:$0x75316420]
        %v390 = vld.sshfl [vmem:[#allocation1 + $0x30] sm:$0xff pattern:$0x75316420]
        %v391 = vld.sshfl [vmem:[#allocation1 + $0x38] sm:$0xff pattern:$0x75316420]
        %392 = vst [vmem:[#allocation1] ss:$2 sm:$0xff] %v276
        %393 = vst [vmem:[%s378] ss:$2 sm:$0xff] %v277
        %394 = vst [vmem:[%s380] ss:$2 sm:$0xff] %v278
        %395 = vst [vmem:[%s382] ss:$2 sm:$0xff] %v279
        %v396 = vld.sshfl [vmem:[#allocation1] sm:$0xff pattern:$0x75316420]
        %v397 = vld.sshfl [vmem:[#allocation1 + $0x8] sm:$0xff pattern:$0x75316420]
        %v398 = vld.sshfl [vmem:[#allocation1 + $0x10] sm:$0xff pattern:$0x75316420]
        %v399 = vld.sshfl [vmem:[#allocation1 + $0x18] sm:$0xff pattern:$0x75316420]
        %v400 = vld.sshfl [vmem:[#allocation1 + $0x20] sm:$0xff pattern:$0x75316420]
        %v401 = vld.sshfl [vmem:[#allocation1 + $0x28] sm:$0xff pattern:$0x75316420]
        %v402 = vld.sshfl [vmem:[#allocation1 + $0x30] sm:$0xff pattern:$0x75316420]
        %v403 = vld.sshfl [vmem:[#allocation1 + $0x38] sm:$0xff pattern:$0x75316420]
        %404 = vst [vmem:[#allocation1] ss:$2 sm:$0xff] %v280
        %405 = vst [vmem:[%s378] ss:$2 sm:$0xff] %v281
        %406 = vst [vmem:[%s380] ss:$2 sm:$0xff] %v282
        %407 = vst [vmem:[%s382] ss:$2 sm:$0xff] %v283
        %v408 = vld.sshfl [vmem:[#allocation1] sm:$0xff pattern:$0x75316420]
        %v409 = vld.sshfl [vmem:[#allocation1 + $0x8] sm:$0xff pattern:$0x75316420]
        %v410 = vld.sshfl [vmem:[#allocation1 + $0x10] sm:$0xff pattern:$0x75316420]
        %v411 = vld.sshfl [vmem:[#allocation1 + $0x18] sm:$0xff pattern:$0x75316420]
        %v412 = vld.sshfl [vmem:[#allocation1 + $0x20] sm:$0xff pattern:$0x75316420]
        %v413 = vld.sshfl [vmem:[#allocation1 + $0x28] sm:$0xff pattern:$0x75316420]
        %v414 = vld.sshfl [vmem:[#allocation1 + $0x30] sm:$0xff pattern:$0x75316420]
        %v415 = vld.sshfl [vmem:[#allocation1 + $0x38] sm:$0xff pattern:$0x75316420]
        %416 = vst [vmem:[#allocation1] ss:$2 sm:$0xff] %v284
        %417 = vst [vmem:[%s378] ss:$2 sm:$0xff] %v285
        %418 = vst [vmem:[%s380] ss:$2 sm:$0xff] %v286
        %419 = vst [vmem:[%s382] ss:$2 sm:$0xff] %v287
        %v420 = vld.sshfl [vmem:[#allocation1] sm:$0xff pattern:$0x75316420]
        %v421 = vld.sshfl [vmem:[#allocation1 + $0x8] sm:$0xff pattern:$0x75316420]
        %v422 = vld.sshfl [vmem:[#allocation1 + $0x10] sm:$0xff pattern:$0x75316420]
        %v423 = vld.sshfl [vmem:[#allocation1 + $0x18] sm:$0xff pattern:$0x75316420]
        %v424 = vld.sshfl [vmem:[#allocation1 + $0x20] sm:$0xff pattern:$0x75316420]
        %v425 = vld.sshfl [vmem:[#allocation1 + $0x28] sm:$0xff pattern:$0x75316420]
        %v426 = vld.sshfl [vmem:[#allocation1 + $0x30] sm:$0xff pattern:$0x75316420]
        %v427 = vld.sshfl [vmem:[#allocation1 + $0x38] sm:$0xff pattern:$0x75316420]
        %v460 = vmul.f32 %v297, %v384
        %v461 = vmul.f32 %v298, %v385
        %v462 = vmul.f32 %v299, %v386
        %v463 = vmul.f32 %v300, %v387
        %v464 = vmul.f32 %v301, %v388
        %v465 = vmul.f32 %v302, %v389
        %v466 = vmul.f32 %v303, %v390
        %v467 = vmul.f32 %v304, %v391
        %v468 = vmul.f32 %v305, %v396
        %v469 = vmul.f32 %v306, %v397
        %v470 = vmul.f32 %v307, %v398
        %v471 = vmul.f32 %v308, %v399
        %v472 = vmul.f32 %v309, %v400
        %v473 = vmul.f32 %v310, %v401
        %v474 = vmul.f32 %v311, %v402
        %v475 = vmul.f32 %v312, %v403
        %v476 = vmul.f32 %v313, %v408
        %v477 = vmul.f32 %v314, %v409
        %v478 = vmul.f32 %v315, %v410
        %v479 = vmul.f32 %v316, %v411
        %v480 = vmul.f32 %v317, %v412
        %v481 = vmul.f32 %v318, %v413
        %v482 = vmul.f32 %v319, %v414
        %v483 = vmul.f32 %v320, %v415
        %v484 = vmul.f32 %v321, %v420
        %v485 = vmul.f32 %v322, %v421
        %v486 = vmul.f32 %v323, %v422
        %v487 = vmul.f32 %v324, %v423
        %v488 = vmul.f32 %v325, %v424
        %v489 = vmul.f32 %v326, %v425
        %v490 = vmul.f32 %v327, %v426
        %v491 = vmul.f32 %v328, %v427
        %v524 = vrot.slane %v461, 4
        %v525 = vrot.slane %v463, 4
        %v526 = vrot.slane %v465, 4
        %v527 = vrot.slane %v467, 4
        %v528 = vrot.slane %v469, 4
        %v529 = vrot.slane %v471, 4
        %v530 = vrot.slane %v473, 4
        %v531 = vrot.slane %v475, 4
        %v532 = vrot.slane %v477, 4
        %v533 = vrot.slane %v479, 4
        %v534 = vrot.slane %v481, 4
        %v535 = vrot.slane %v483, 4
        %v536 = vrot.slane %v485, 4
        %v537 = vrot.slane %v487, 4
        %v538 = vrot.slane %v489, 4
        %v539 = vrot.slane %v491, 4
        %vm540 = vcmask 1043456
        %v541 = vsel %vm540, %v460, %v524
        %v542 = vsel %vm540, %v462, %v525
        %v543 = vsel %vm540, %v464, %v526
        %v544 = vsel %vm540, %v466, %v527
        %v545 = vsel %vm540, %v468, %v528
        %v546 = vsel %vm540, %v470, %v529
        %v547 = vsel %vm540, %v472, %v530
        %v548 = vsel %vm540, %v474, %v531
        %v549 = vsel %vm540, %v476, %v532
        %v550 = vsel %vm540, %v478, %v533
        %v551 = vsel %vm540, %v480, %v534
        %v552 = vsel %vm540, %v482, %v535
        %v553 = vsel %vm540, %v484, %v536
        %v554 = vsel %vm540, %v486, %v537
        %v555 = vsel %vm540, %v488, %v538
        %v556 = vsel %vm540, %v490, %v539
        %573 = vst [vmem:[%s263] sm:$0xff] %v541
        %574 = vst [vmem:[%s263 + $0x8] sm:$0xff] %v542
        %575 = vst [vmem:[%s263 + $0x10] sm:$0xff] %v543
        %576 = vst [vmem:[%s263 + $0x18] sm:$0xff] %v544
        %577 = vst [vmem:[%s263 + $0x20] sm:$0xff] %v545
        %578 = vst [vmem:[%s263 + $0x28] sm:$0xff] %v546
        %579 = vst [vmem:[%s263 + $0x30] sm:$0xff] %v547
        %580 = vst [vmem:[%s263 + $0x38] sm:$0xff] %v548
        %581 = vst [vmem:[%s263 + $0x40] sm:$0xff] %v549
        %582 = vst [vmem:[%s263 + $0x48] sm:$0xff] %v550
        %583 = vst [vmem:[%s263 + $0x50] sm:$0xff] %v551
        %584 = vst [vmem:[%s263 + $0x58] sm:$0xff] %v552
        %585 = vst [vmem:[%s263 + $0x60] sm:$0xff] %v553
        %586 = vst [vmem:[%s263 + $0x68] sm:$0xff] %v554
        %587 = vst [vmem:[%s263 + $0x70] sm:$0xff] %v555
        %588 = vst [vmem:[%s263 + $0x78] sm:$0xff] %v556
        %s589 = sand.u32 %s134, 1
        %s590 = scalar_lea.sflag [#allocation5], %s589
        %s591 = sand.u32 %s134, 1
        %s592 = smul.addr %s591, 128
        %s593 = scalar_lea.vmem [#allocation8], %s592
        // Predicated region
        $region41: #{tpu_custom_call.1} parent=31 // pred_check
          %p594 = pneg %p144
        $region42: #{tpu_custom_call.1} parent=31 // pred_check_branch
          %596 = sbr.rel (%p594) target = $region44
        $region43: #{tpu_custom_call.1} parent=31 // pred_region
          %s597 = smul.u32 32, %s30
          %599 = vsyncadd %s590, 0
          %s600 = smul.addr %s31, 32
          %s601 = sadd.s32 %s597, %s600
          %s602 = smul.addr %s29, 32
          %s603 = sadd.s32 %s601, %s602
          %s604 = smul.addr %s603, 4
          %s605 = scalar_lea.hbm %s3, %s604
          %s607 = sshll.u32 %s593, 4
          %s608 = int_to_ptr.vmem [resolvable:$true] %s607
          %s609 = sshll.u32 %s605, 4
          %s610 = int_to_ptr.hbm [resolvable:$true] %s609
          %612 = dma.vmem_to_hbm [thread:$0]  %s608, 2048, %s610, %s590
        $region44: #{tpu_custom_call.1} parent=31 // pred_fallthru
          _
      $region32: #{tpu_custom_call.1} parent=5 // pred_fallthru
        _
      %p613 = scmp.le.s32.totalorder 2, %s19
      // Predicated region
      $region45: #{tpu_custom_call.1} parent=5 // pred_check
        %p614 = pneg %p613
      $region46: #{tpu_custom_call.1} parent=5 // pred_check_branch
        %616 = sbr.rel (%p614) target = $region48
      $region47: #{tpu_custom_call.1} parent=5 // pred_region
        %s617 = ssub.s32 %s19, 2
        // Predicated region
        $region49: #{tpu_custom_call.1} parent=47 // pred_check
          %p618 = pneg %p150
        $region50: #{tpu_custom_call.1} parent=47 // pred_check_branch
          %620 = sbr.rel (%p618) target = $region52
        $region51: #{tpu_custom_call.1} parent=47 // pred_region
          %s621 = sand.u32 %s135, 1
          %s622 = scalar_lea.sflag [#allocation5], %s621
          %s623 = sand.u32 %s135, 1
          %s624 = smul.addr %s623, 128
          %s625 = scalar_lea.vmem [#allocation8], %s624
          %627 = dma.done %s622, 2048
        $region52: #{tpu_custom_call.1} parent=47 // pred_fallthru
          _
      $region48: #{tpu_custom_call.1} parent=5 // pred_fallthru
        _
    $region6: #{tpu_custom_call.1} parent=1 // loop_footer
      %s23 = sadd.s32 1, %s19
    $region7: #{tpu_custom_call.1} parent=1 // loop_footer_branch
      %18 = sbr.rel target = $region3
    $region8: #{tpu_custom_call.1} parent=1 // loop_exit
      _
    %628 = vsyncpa [#allocation4], 1
    %s629 = scalar_lea.sflag [#allocation4], 1
    %630 = vsyncpa %s629, 1
    %631 = vsyncpa [#allocation7], 1
    %s632 = scalar_lea.sflag [#allocation7], 1
    %633 = vsyncpa %s632, 1
    %634 = vsyncpa [#allocation5], 1
    %s635 = scalar_lea.sflag [#allocation5], 1
    %636 = vsyncpa %s635, 1

</llo_original>
